<compile_context>
chip_gen: v7x
topology: tpu7x:2x2x1
jax: 0.10.0
libtpu: 0.0.40
codegen_flags: <defaults>
</compile_context>

<pallas_src>
import jax
import jax.numpy as jnp
from jax.experimental import pallas as pl
from jax.experimental.pallas import tpu as pltpu

NEG_SLOPE = 0.01  # nn.LeakyReLU default
LANE = 128        # lane-dense padded feature width


def _leaky_relu(x):
    return jnp.where(x > 0, x, NEG_SLOPE * x)


# ---------------------------------------------------------------------------
# Fused Pallas kernel (all GIN layers + linear head, one invocation, grid=())
# ---------------------------------------------------------------------------
def make_ginnet_kernel(num_gin_blocks):
    def kernel(*refs):
        eps_ref = refs[0]                                   # SMEM (L,) f32
        a_ref = refs[1]                                     # VMEM [N, N] bf16, row-normalized adj
        x_ref = refs[2]                                     # VMEM [N, 128] f32 padded features
        layer_refs = refs[3:3 + 4 * num_gin_blocks]         # per layer: w1,b1,w2,b2
        out_w_ref, out_b_ref, n_out_ref, n_embed_ref = refs[3 + 4 * num_gin_blocks:]

        a = a_ref[...]                                      # bf16 MXU operand, loaded once
        h = x_ref[...]                                      # f32 activations, stay on-chip
        for l in range(num_gin_blocks):                     # static unrolled layer loop
            w1_ref, b1_ref, w2_ref, b2_ref = layer_refs[4 * l: 4 * l + 4]
            # mean aggregation over in-neighbors: row-normalized A @ h (bf16 MXU, f32 accum)
            agg = jnp.dot(a, h.astype(jnp.bfloat16),
                          preferred_element_type=jnp.float32)
            z = (1.0 + eps_ref[l]) * h + agg                # eps scalar read from SMEM
            # apply_func: Linear -> Dropout(0.1)[identity in eval] -> LeakyReLU -> Linear -> LeakyReLU
            z1 = jnp.dot(z.astype(jnp.bfloat16), w1_ref[...],
                         preferred_element_type=jnp.float32) + b1_ref[...]
            z1 = _leaky_relu(z1)
            z2 = jnp.dot(z1.astype(jnp.bfloat16), w2_ref[...],
                         preferred_element_type=jnp.float32) + b2_ref[...]
            h = _leaky_relu(z2)

        n_embed_ref[...] = h                                # lane-dense [N, 128] store
        n_out_ref[...] = (jnp.dot(h.astype(jnp.bfloat16), out_w_ref[...],
                                  preferred_element_type=jnp.float32) + out_b_ref[...])
    return kernel


# ---------------------------------------------------------------------------
# Wrapper: pre-normalize adjacency, zero-pad features/weights to 128 lanes
# ---------------------------------------------------------------------------
def _pad2(x, rows, cols):
    return jnp.pad(x, ((0, rows - x.shape[0]), (0, cols - x.shape[1])))


def ginnet_forward(adj, fvs, gin_params, out_w_t, out_b):
    """Equivalent of GINNet.forward(g): returns (n_out, n_embed)."""
    n = adj.shape[0]
    num_blocks = len(gin_params)
    node_embed_dim = gin_params[-1]["w2"].shape[1]
    out_ch = out_w_t.shape[1]
    fv_dim = fvs.shape[1]

    # Pre-normalize adjacency once: A_norm[i, j] = adj[i, j] / in_degree(i)  (0 if deg==0).
    deg = jnp.sum(adj, axis=1, keepdims=True)
    a_norm = (adj / jnp.maximum(deg, 1.0)).astype(jnp.bfloat16)

    # Lane-dense padded features (padded columns stay exactly zero through all layers
    # because the padded weight rows/cols and biases are zero and LeakyReLU(0)=0).
    x = _pad2(fvs, n, LANE).astype(jnp.float32)
    eps_vec = jnp.stack([p["eps"] for p in gin_params]).astype(jnp.float32)   # (L,) -> SMEM

    args = [eps_vec, a_norm, x]
    for p in gin_params:
        args += [_pad2(p["w1"], LANE, LANE).astype(jnp.bfloat16),
                 _pad2(p["b1"], 1, LANE).astype(jnp.float32),
                 _pad2(p["w2"], LANE, LANE).astype(jnp.bfloat16),
                 _pad2(p["b2"], 1, LANE).astype(jnp.float32)]
    args += [_pad2(out_w_t, LANE, LANE).astype(jnp.bfloat16),   # gnn_out weight, pre-transposed
             _pad2(out_b, 1, LANE).astype(jnp.float32)]

    smem = pl.BlockSpec(memory_space=pltpu.MemorySpace.SMEM)
    vmem = pl.BlockSpec(memory_space=pltpu.MemorySpace.VMEM)

    n_out_p, n_embed_p = pl.pallas_call(
        make_ginnet_kernel(num_blocks),
        out_shape=(jax.ShapeDtypeStruct((n, LANE), jnp.float32),
                   jax.ShapeDtypeStruct((n, LANE), jnp.float32)),
        in_specs=[smem] + [vmem] * (len(args) - 1),
        out_specs=(vmem, vmem),
    )(*args)

    # Slice away the lane padding outside the kernel.
    return n_out_p[:, :out_ch], n_embed_p[:, :node_embed_dim]


# ---------------------------------------------------------------------------
# Pure-JAX f32 reference (for a loose numerical sanity check vs. bf16 MXU path)
# ---------------------------------------------------------------------------
def ginnet_forward_ref(adj, fvs, gin_params, out_w_t, out_b):
    deg = jnp.sum(adj, axis=1, keepdims=True)
    deg_inv = jnp.where(deg > 0, 1.0 / deg, 0.0)
    h = fvs
    for p in gin_params:
        agg = (adj @ h) * deg_inv
        z = (1.0 + p["eps"]) * h + agg
        z1 = _leaky_relu(z @ p["w1"] + p["b1"])
        h = _leaky_relu(z1 @ p["w2"] + p["b2"])
    n_embed = h
    n_out = n_embed @ out_w_t + out_b
    return n_out, n_embed


# ---------------------------------------------------------------------------
# Parameter construction (deterministic, synthetic — no checkpoint load)
# ---------------------------------------------------------------------------
def make_mlp_params(key, d_in, d_hid):
    k1, k2 = jax.random.split(key)
    w1 = jax.random.normal(k1, (d_in, d_hid), jnp.float32) * 0.1
    b1 = jnp.zeros((1, d_hid), jnp.float32)
    w2 = jax.random.normal(k2, (d_hid, d_hid), jnp.float32) * 0.1
    b2 = jnp.zeros((1, d_hid), jnp.float32)
    eps = jnp.zeros((), jnp.float32)  # DGL GINConv init_eps = 0.0 (learnable)
    return dict(eps=eps, w1=w1, b1=b1, w2=w2, b2=b2)


if __name__ == "__main__":
    # Small config consistent with GINNet.__init__ (only the GNN branch is touched
    # by GINNet.forward; the 3-D CNN branch is not on this forward path).
    num_gin_layers = 2
    fv_dim = 32                  # in_dim of GIN == fv_dim
    num_hiddens = [32, 32]
    node_embed_dim = 16
    out_ch = 4
    n_nodes = 16

    key = jax.random.PRNGKey(0)
    k_adj, k_fv, k_par = jax.random.split(key, 3)

    # deterministic random graph (dense adjacency, dst x src), no self-loops
    adj = (jax.random.uniform(k_adj, (n_nodes, n_nodes)) < 0.3).astype(jnp.float32)
    adj = adj * (1.0 - jnp.eye(n_nodes, dtype=jnp.float32))

    # node features g.ndata['fvs']
    fvs = jax.random.normal(k_fv, (n_nodes, fv_dim), jnp.float32)

    # GIN layer dims: [fv_dim -> 32], [32 -> 32], final block [32 -> node_embed_dim]
    layer_dims = []
    for l in range(num_gin_layers):
        d_in = fv_dim if l == 0 else num_hiddens[l - 1]
        layer_dims.append((d_in, num_hiddens[l]))
    layer_dims.append((num_hiddens[num_gin_layers - 1], node_embed_dim))

    keys = jax.random.split(k_par, len(layer_dims) + 1)
    gin_params = [make_mlp_params(keys[i], d_in, d_hid)
                  for i, (d_in, d_hid) in enumerate(layer_dims)]

    # gnn_out: nn.Linear(node_embed_dim, out_ch) — weight passed pre-transposed [Din, Dout]
    out_w_t = jax.random.normal(keys[-1], (node_embed_dim, out_ch), jnp.float32) * 0.1
    out_b = jnp.zeros((1, out_ch), jnp.float32)

    # TODO(synk): Dropout(0.1) inside each GIN MLP is implemented as identity (eval mode).
    fwd = jax.jit(ginnet_forward)
    n_out, n_embed = fwd(adj, fvs, gin_params, out_w_t, out_b)
    jax.block_until_ready((n_out, n_embed))

    assert n_out.shape == (n_nodes, out_ch)
    assert n_embed.shape == (n_nodes, node_embed_dim)

    # sanity check against pure-JAX f32 reference (loose tol: bf16 MXU operands)
    n_out_ref, n_embed_ref = ginnet_forward_ref(adj, fvs, gin_params, out_w_t, out_b)
    assert jnp.allclose(n_out, n_out_ref, rtol=5e-2, atol=5e-2)
    assert jnp.allclose(n_embed, n_embed_ref, rtol=5e-2, atol=5e-2)

    print("KERNEL_OK")
</pallas_src>

<mosaic_0001>
module attributes {stable_mosaic.version = 11 : i64} {
  func.func @kernel(%arg0: memref<3xf32, #tpu.memory_space<smem>>, %arg1: memref<16x16xbf16, #tpu.memory_space<vmem>>, %arg2: memref<16x128xf32, #tpu.memory_space<vmem>>, %arg3: memref<128x128xbf16, #tpu.memory_space<vmem>>, %arg4: memref<1x128xf32, #tpu.memory_space<vmem>>, %arg5: memref<128x128xbf16, #tpu.memory_space<vmem>>, %arg6: memref<1x128xf32, #tpu.memory_space<vmem>>, %arg7: memref<128x128xbf16, #tpu.memory_space<vmem>>, %arg8: memref<1x128xf32, #tpu.memory_space<vmem>>, %arg9: memref<128x128xbf16, #tpu.memory_space<vmem>>, %arg10: memref<1x128xf32, #tpu.memory_space<vmem>>, %arg11: memref<128x128xbf16, #tpu.memory_space<vmem>>, %arg12: memref<1x128xf32, #tpu.memory_space<vmem>>, %arg13: memref<128x128xbf16, #tpu.memory_space<vmem>>, %arg14: memref<1x128xf32, #tpu.memory_space<vmem>>, %arg15: memref<128x128xbf16, #tpu.memory_space<vmem>>, %arg16: memref<1x128xf32, #tpu.memory_space<vmem>>, %arg17: memref<16x128xf32, #tpu.memory_space<vmem>>, %arg18: memref<16x128xf32, #tpu.memory_space<vmem>>) attributes {dimension_semantics = [], scalar_prefetch = 0 : i64, scratch_operands = 0 : i64, tpu.core_type = #tpu.core_type<tc>} {
    %c0 = arith.constant 0 : index
    %c0_0 = arith.constant 0 : index
    %0 = vector.load %arg1[%c0, %c0_0] : memref<16x16xbf16, #tpu.memory_space<vmem>>, vector<16x16xbf16>
    %c0_1 = arith.constant 0 : index
    %c0_2 = arith.constant 0 : index
    %1 = vector.load %arg2[%c0_1, %c0_2] : memref<16x128xf32, #tpu.memory_space<vmem>>, vector<16x128xf32>
    %2 = arith.truncf %1 : vector<16x128xf32> to vector<16x128xbf16>
    %cst = arith.constant dense<0.000000e+00> : vector<16x128xf32>
    %3 = tpu.matmul %0, %2, %cst {dimension_numbers = #tpu.dot_dimension_numbers<[1], [0], [0], [1], [0, 0, 1, 1], [], []>} : vector<16x16xbf16>, vector<16x128xbf16>, vector<16x128xf32> -> vector<16x128xf32>
    %c0_3 = arith.constant 0 : index
    %4 = memref.load %arg0[%c0_3] : memref<3xf32, #tpu.memory_space<smem>>
    %cst_4 = arith.constant 1.000000e+00 : f32
    %5 = arith.addf %cst_4, %4 : f32
    %6 = vector.broadcast %5 : f32 to vector<16x128xf32>
    %7 = arith.mulf %6, %1 : vector<16x128xf32>
    %8 = arith.addf %7, %3 : vector<16x128xf32>
    %9 = arith.truncf %8 : vector<16x128xf32> to vector<16x128xbf16>
    %c0_5 = arith.constant 0 : index
    %c0_6 = arith.constant 0 : index
    %10 = vector.load %arg3[%c0_5, %c0_6] : memref<128x128xbf16, #tpu.memory_space<vmem>>, vector<128x128xbf16>
    %cst_7 = arith.constant dense<0.000000e+00> : vector<16x128xf32>
    %11 = tpu.matmul %9, %10, %cst_7 {dimension_numbers = #tpu.dot_dimension_numbers<[1], [0], [0], [1], [0, 0, 1, 1], [], []>} : vector<16x128xbf16>, vector<128x128xbf16>, vector<16x128xf32> -> vector<16x128xf32>
    %c0_8 = arith.constant 0 : index
    %c0_9 = arith.constant 0 : index
    %12 = vector.load %arg4[%c0_8, %c0_9] : memref<1x128xf32, #tpu.memory_space<vmem>>, vector<1x128xf32>
    %13 = vector.broadcast %12 : vector<1x128xf32> to vector<16x128xf32>
    %14 = arith.addf %11, %13 : vector<16x128xf32>
    %cst_10 = arith.constant 0.000000e+00 : f32
    %15 = vector.broadcast %cst_10 : f32 to vector<16x128xf32>
    %16 = arith.cmpf ogt, %14, %15 : vector<16x128xf32>
    %cst_11 = arith.constant 0.00999999977 : f32
    %17 = vector.broadcast %cst_11 : f32 to vector<16x128xf32>
    %18 = arith.mulf %17, %14 : vector<16x128xf32>
    %19 = arith.select %16, %14, %18 : vector<16x128xi1>, vector<16x128xf32>
    %20 = arith.truncf %19 : vector<16x128xf32> to vector<16x128xbf16>
    %c0_12 = arith.constant 0 : index
    %c0_13 = arith.constant 0 : index
    %21 = vector.load %arg5[%c0_12, %c0_13] : memref<128x128xbf16, #tpu.memory_space<vmem>>, vector<128x128xbf16>
    %cst_14 = arith.constant dense<0.000000e+00> : vector<16x128xf32>
    %22 = tpu.matmul %20, %21, %cst_14 {dimension_numbers = #tpu.dot_dimension_numbers<[1], [0], [0], [1], [0, 0, 1, 1], [], []>} : vector<16x128xbf16>, vector<128x128xbf16>, vector<16x128xf32> -> vector<16x128xf32>
    %c0_15 = arith.constant 0 : index
    %c0_16 = arith.constant 0 : index
    %23 = vector.load %arg6[%c0_15, %c0_16] : memref<1x128xf32, #tpu.memory_space<vmem>>, vector<1x128xf32>
    %24 = vector.broadcast %23 : vector<1x128xf32> to vector<16x128xf32>
    %25 = arith.addf %22, %24 : vector<16x128xf32>
    %cst_17 = arith.constant 0.000000e+00 : f32
    %26 = vector.broadcast %cst_17 : f32 to vector<16x128xf32>
    %27 = arith.cmpf ogt, %25, %26 : vector<16x128xf32>
    %cst_18 = arith.constant 0.00999999977 : f32
    %28 = vector.broadcast %cst_18 : f32 to vector<16x128xf32>
    %29 = arith.mulf %28, %25 : vector<16x128xf32>
    %30 = arith.select %27, %25, %29 : vector<16x128xi1>, vector<16x128xf32>
    %31 = arith.truncf %30 : vector<16x128xf32> to vector<16x128xbf16>
    %cst_19 = arith.constant dense<0.000000e+00> : vector<16x128xf32>
    %32 = tpu.matmul %0, %31, %cst_19 {dimension_numbers = #tpu.dot_dimension_numbers<[1], [0], [0], [1], [0, 0, 1, 1], [], []>} : vector<16x16xbf16>, vector<16x128xbf16>, vector<16x128xf32> -> vector<16x128xf32>
    %c1 = arith.constant 1 : index
    %33 = memref.load %arg0[%c1] : memref<3xf32, #tpu.memory_space<smem>>
    %cst_20 = arith.constant 1.000000e+00 : f32
    %34 = arith.addf %cst_20, %33 : f32
    %35 = vector.broadcast %34 : f32 to vector<16x128xf32>
    %36 = arith.mulf %35, %30 : vector<16x128xf32>
    %37 = arith.addf %36, %32 : vector<16x128xf32>
    %38 = arith.truncf %37 : vector<16x128xf32> to vector<16x128xbf16>
    %c0_21 = arith.constant 0 : index
    %c0_22 = arith.constant 0 : index
    %39 = vector.load %arg7[%c0_21, %c0_22] : memref<128x128xbf16, #tpu.memory_space<vmem>>, vector<128x128xbf16>
    %cst_23 = arith.constant dense<0.000000e+00> : vector<16x128xf32>
    %40 = tpu.matmul %38, %39, %cst_23 {dimension_numbers = #tpu.dot_dimension_numbers<[1], [0], [0], [1], [0, 0, 1, 1], [], []>} : vector<16x128xbf16>, vector<128x128xbf16>, vector<16x128xf32> -> vector<16x128xf32>
    %c0_24 = arith.constant 0 : index
    %c0_25 = arith.constant 0 : index
    %41 = vector.load %arg8[%c0_24, %c0_25] : memref<1x128xf32, #tpu.memory_space<vmem>>, vector<1x128xf32>
    %42 = vector.broadcast %41 : vector<1x128xf32> to vector<16x128xf32>
    %43 = arith.addf %40, %42 : vector<16x128xf32>
    %cst_26 = arith.constant 0.000000e+00 : f32
    %44 = vector.broadcast %cst_26 : f32 to vector<16x128xf32>
    %45 = arith.cmpf ogt, %43, %44 : vector<16x128xf32>
    %cst_27 = arith.constant 0.00999999977 : f32
    %46 = vector.broadcast %cst_27 : f32 to vector<16x128xf32>
    %47 = arith.mulf %46, %43 : vector<16x128xf32>
    %48 = arith.select %45, %43, %47 : vector<16x128xi1>, vector<16x128xf32>
    %49 = arith.truncf %48 : vector<16x128xf32> to vector<16x128xbf16>
    %c0_28 = arith.constant 0 : index
    %c0_29 = arith.constant 0 : index
    %50 = vector.load %arg9[%c0_28, %c0_29] : memref<128x128xbf16, #tpu.memory_space<vmem>>, vector<128x128xbf16>
    %cst_30 = arith.constant dense<0.000000e+00> : vector<16x128xf32>
    %51 = tpu.matmul %49, %50, %cst_30 {dimension_numbers = #tpu.dot_dimension_numbers<[1], [0], [0], [1], [0, 0, 1, 1], [], []>} : vector<16x128xbf16>, vector<128x128xbf16>, vector<16x128xf32> -> vector<16x128xf32>
    %c0_31 = arith.constant 0 : index
    %c0_32 = arith.constant 0 : index
    %52 = vector.load %arg10[%c0_31, %c0_32] : memref<1x128xf32, #tpu.memory_space<vmem>>, vector<1x128xf32>
    %53 = vector.broadcast %52 : vector<1x128xf32> to vector<16x128xf32>
    %54 = arith.addf %51, %53 : vector<16x128xf32>
    %cst_33 = arith.constant 0.000000e+00 : f32
    %55 = vector.broadcast %cst_33 : f32 to vector<16x128xf32>
    %56 = arith.cmpf ogt, %54, %55 : vector<16x128xf32>
    %cst_34 = arith.constant 0.00999999977 : f32
    %57 = vector.broadcast %cst_34 : f32 to vector<16x128xf32>
    %58 = arith.mulf %57, %54 : vector<16x128xf32>
    %59 = arith.select %56, %54, %58 : vector<16x128xi1>, vector<16x128xf32>
    %60 = arith.truncf %59 : vector<16x128xf32> to vector<16x128xbf16>
    %cst_35 = arith.constant dense<0.000000e+00> : vector<16x128xf32>
    %61 = tpu.matmul %0, %60, %cst_35 {dimension_numbers = #tpu.dot_dimension_numbers<[1], [0], [0], [1], [0, 0, 1, 1], [], []>} : vector<16x16xbf16>, vector<16x128xbf16>, vector<16x128xf32> -> vector<16x128xf32>
    %c2 = arith.constant 2 : index
    %62 = memref.load %arg0[%c2] : memref<3xf32, #tpu.memory_space<smem>>
    %cst_36 = arith.constant 1.000000e+00 : f32
    %63 = arith.addf %cst_36, %62 : f32
    %64 = vector.broadcast %63 : f32 to vector<16x128xf32>
    %65 = arith.mulf %64, %59 : vector<16x128xf32>
    %66 = arith.addf %65, %61 : vector<16x128xf32>
    %67 = arith.truncf %66 : vector<16x128xf32> to vector<16x128xbf16>
    %c0_37 = arith.constant 0 : index
    %c0_38 = arith.constant 0 : index
    %68 = vector.load %arg11[%c0_37, %c0_38] : memref<128x128xbf16, #tpu.memory_space<vmem>>, vector<128x128xbf16>
    %cst_39 = arith.constant dense<0.000000e+00> : vector<16x128xf32>
    %69 = tpu.matmul %67, %68, %cst_39 {dimension_numbers = #tpu.dot_dimension_numbers<[1], [0], [0], [1], [0, 0, 1, 1], [], []>} : vector<16x128xbf16>, vector<128x128xbf16>, vector<16x128xf32> -> vector<16x128xf32>
    %c0_40 = arith.constant 0 : index
    %c0_41 = arith.constant 0 : index
    %70 = vector.load %arg12[%c0_40, %c0_41] : memref<1x128xf32, #tpu.memory_space<vmem>>, vector<1x128xf32>
    %71 = vector.broadcast %70 : vector<1x128xf32> to vector<16x128xf32>
    %72 = arith.addf %69, %71 : vector<16x128xf32>
    %cst_42 = arith.constant 0.000000e+00 : f32
    %73 = vector.broadcast %cst_42 : f32 to vector<16x128xf32>
    %74 = arith.cmpf ogt, %72, %73 : vector<16x128xf32>
    %cst_43 = arith.constant 0.00999999977 : f32
    %75 = vector.broadcast %cst_43 : f32 to vector<16x128xf32>
    %76 = arith.mulf %75, %72 : vector<16x128xf32>
    %77 = arith.select %74, %72, %76 : vector<16x128xi1>, vector<16x128xf32>
    %78 = arith.truncf %77 : vector<16x128xf32> to vector<16x128xbf16>
    %c0_44 = arith.constant 0 : index
    %c0_45 = arith.constant 0 : index
    %79 = vector.load %arg13[%c0_44, %c0_45] : memref<128x128xbf16, #tpu.memory_space<vmem>>, vector<128x128xbf16>
    %cst_46 = arith.constant dense<0.000000e+00> : vector<16x128xf32>
    %80 = tpu.matmul %78, %79, %cst_46 {dimension_numbers = #tpu.dot_dimension_numbers<[1], [0], [0], [1], [0, 0, 1, 1], [], []>} : vector<16x128xbf16>, vector<128x128xbf16>, vector<16x128xf32> -> vector<16x128xf32>
    %c0_47 = arith.constant 0 : index
    %c0_48 = arith.constant 0 : index
    %81 = vector.load %arg14[%c0_47, %c0_48] : memref<1x128xf32, #tpu.memory_space<vmem>>, vector<1x128xf32>
    %82 = vector.broadcast %81 : vector<1x128xf32> to vector<16x128xf32>
    %83 = arith.addf %80, %82 : vector<16x128xf32>
    %cst_49 = arith.constant 0.000000e+00 : f32
    %84 = vector.broadcast %cst_49 : f32 to vector<16x128xf32>
    %85 = arith.cmpf ogt, %83, %84 : vector<16x128xf32>
    %cst_50 = arith.constant 0.00999999977 : f32
    %86 = vector.broadcast %cst_50 : f32 to vector<16x128xf32>
    %87 = arith.mulf %86, %83 : vector<16x128xf32>
    %88 = arith.select %85, %83, %87 : vector<16x128xi1>, vector<16x128xf32>
    %c0_51 = arith.constant 0 : index
    %c0_52 = arith.constant 0 : index
    %89 = vector.load %arg18[%c0_51, %c0_52] : memref<16x128xf32, #tpu.memory_space<vmem>>, vector<16x128xf32>
    tpu.vector_store %arg18[%c0_51, %c0_52], %88 {strides = array<i32>} : memref<16x128xf32, #tpu.memory_space<vmem>>, vector<16x128xf32>,
    %90 = arith.truncf %88 : vector<16x128xf32> to vector<16x128xbf16>
    %c0_53 = arith.constant 0 : index
    %c0_54 = arith.constant 0 : index
    %91 = vector.load %arg15[%c0_53, %c0_54] : memref<128x128xbf16, #tpu.memory_space<vmem>>, vector<128x128xbf16>
    %cst_55 = arith.constant dense<0.000000e+00> : vector<16x128xf32>
    %92 = tpu.matmul %90, %91, %cst_55 {dimension_numbers = #tpu.dot_dimension_numbers<[1], [0], [0], [1], [0, 0, 1, 1], [], []>} : vector<16x128xbf16>, vector<128x128xbf16>, vector<16x128xf32> -> vector<16x128xf32>
    %c0_56 = arith.constant 0 : index
    %c0_57 = arith.constant 0 : index
    %93 = vector.load %arg16[%c0_56, %c0_57] : memref<1x128xf32, #tpu.memory_space<vmem>>, vector<1x128xf32>
    %94 = vector.broadcast %93 : vector<1x128xf32> to vector<16x128xf32>
    %95 = arith.addf %92, %94 : vector<16x128xf32>
    %c0_58 = arith.constant 0 : index
    %c0_59 = arith.constant 0 : index
    %96 = vector.load %arg17[%c0_58, %c0_59] : memref<16x128xf32, #tpu.memory_space<vmem>>, vector<16x128xf32>
    tpu.vector_store %arg17[%c0_58, %c0_59], %95 {strides = array<i32>} : memref<16x128xf32, #tpu.memory_space<vmem>>, vector<16x128xf32>,
    return
  }
}

</mosaic_0001>

<llo_original>
// kernel: ginnet_forward.1
$region0: #{ginnet_forward.1}
  #allocation0 [shape = 'u32[]', space=smem, size = 0x4, offset = 0x4, fixed_abs, tag = 'smem constant byte address 0x4 - core index']
  #allocation1 [shape = 'u32[144,128]{1,0:T(1,128)}', space=vmem, size = 0x12000, scoped, tag = 'internal scratch']
  %s0 = inlined_call_operand.vmem [shape: f32[3], index: 0, kind: input, shape index: {}]
  %s1 = inlined_call_operand.vmem [shape: bf16[16,16], index: 1, kind: input, shape index: {}]
  %s2 = inlined_call_operand.vmem [shape: f32[16,128], index: 2, kind: input, shape index: {}]
  %s3 = inlined_call_operand.vmem [shape: bf16[128,128], index: 3, kind: input, shape index: {}]
  %s4 = inlined_call_operand.vmem [shape: f32[1,128], index: 4, kind: input, shape index: {}]
  %s5 = inlined_call_operand.vmem [shape: bf16[128,128], index: 5, kind: input, shape index: {}]
  %s6 = inlined_call_operand.vmem [shape: f32[1,128], index: 6, kind: input, shape index: {}]
  %s7 = inlined_call_operand.vmem [shape: bf16[128,128], index: 7, kind: input, shape index: {}]
  %s8 = inlined_call_operand.vmem [shape: f32[1,128], index: 8, kind: input, shape index: {}]
  %s9 = inlined_call_operand.vmem [shape: bf16[128,128], index: 9, kind: input, shape index: {}]
  %s10 = inlined_call_operand.vmem [shape: f32[1,128], index: 10, kind: input, shape index: {}]
  %s11 = inlined_call_operand.vmem [shape: bf16[128,128], index: 11, kind: input, shape index: {}]
  %s12 = inlined_call_operand.vmem [shape: f32[1,128], index: 12, kind: input, shape index: {}]
  %s13 = inlined_call_operand.vmem [shape: bf16[128,128], index: 13, kind: input, shape index: {}]
  %s14 = inlined_call_operand.vmem [shape: f32[1,128], index: 14, kind: input, shape index: {}]
  %s15 = inlined_call_operand.vmem [shape: bf16[128,128], index: 15, kind: input, shape index: {}]
  %s16 = inlined_call_operand.vmem [shape: f32[1,128], index: 16, kind: input, shape index: {}]
  %s17 = inlined_call_operand.vmem [shape: f32[16,128], index: 17, kind: output, shape index: {0}]
  %s18 = inlined_call_operand.hbm [shape: f32[16,128], index: 18, kind: output, shape index: {1}]
  %19 = xla_tuple %s17, %s18
  %s20 = sld [smem:[#allocation0]]
  $region90: #{ginnet_forward.1} parent=0
    _
  %s22 = ssub.s32 1, %s20
  %s23 = scalar_select 0, %s22, %s20
  $region1: #{ginnet_forward.1} parent=0
    #allocation2 [shape = 'u8[512]{0}', space=smem, size = 0x200, scoped, tag = 'input window, operand 0, single buffered']
    #allocation3 [shape = 's32[1]{0}', space=sflag, size = 0x4, scoped, tag = 'scoped memory for ginnet_forward.1']
    #allocation4 [shape = 's32[1]{0}', space=sflag, size = 0x4, scoped, tag = 'scoped memory for ginnet_forward.1']
    #allocation5 [shape = 'u8[8192]{0}', space=vmem, size = 0x2000, scoped, tag = 'output window, operand 1, single buffered']
    %24 = vsyncpa [#allocation4], 0
    %25 = vsyncpa [#allocation3], 0
    // Predicated region
    $region2: #{ginnet_forward.1} parent=1 // pred_check
      _
    $region3: #{ginnet_forward.1} parent=1 // pred_check_branch
      %27 = sbr.rel (0) target = $region5
    $region4: #{ginnet_forward.1} parent=1 // pred_region
      %s29 = ssub.s32 16, 16
      %30 = vsyncadd [#allocation4], %s29
      %s32 = sshll.u32 %s0, 4
      %s33 = int_to_ptr.vmem [resolvable:$true] %s32
      %35 = dma.vmem_to_smem %s33, 16, [#allocation2], [#allocation4]
    $region5: #{ginnet_forward.1} parent=1 // pred_fallthru
      _
    // Predicated region
    $region6: #{ginnet_forward.1} parent=1 // pred_check
      _
    $region7: #{ginnet_forward.1} parent=1 // pred_check_branch
      %37 = sbr.rel (0) target = $region9
    $region8: #{ginnet_forward.1} parent=1 // pred_region
      _
    $region9: #{ginnet_forward.1} parent=1 // pred_fallthru
      _
    // Predicated region
    $region10: #{ginnet_forward.1} parent=1 // pred_check
      _
    $region11: #{ginnet_forward.1} parent=1 // pred_check_branch
      %39 = sbr.rel (0) target = $region13
    $region12: #{ginnet_forward.1} parent=1 // pred_region
      _
    $region13: #{ginnet_forward.1} parent=1 // pred_fallthru
      _
    // Predicated region
    $region14: #{ginnet_forward.1} parent=1 // pred_check
      _
    $region15: #{ginnet_forward.1} parent=1 // pred_check_branch
      %41 = sbr.rel (0) target = $region17
    $region16: #{ginnet_forward.1} parent=1 // pred_region
      _
    $region17: #{ginnet_forward.1} parent=1 // pred_fallthru
      _
    // Predicated region
    $region18: #{ginnet_forward.1} parent=1 // pred_check
      _
    $region19: #{ginnet_forward.1} parent=1 // pred_check_branch
      %43 = sbr.rel (0) target = $region21
    $region20: #{ginnet_forward.1} parent=1 // pred_region
      _
    $region21: #{ginnet_forward.1} parent=1 // pred_fallthru
      _
    // Predicated region
    $region22: #{ginnet_forward.1} parent=1 // pred_check
      _
    $region23: #{ginnet_forward.1} parent=1 // pred_check_branch
      %45 = sbr.rel (0) target = $region25
    $region24: #{ginnet_forward.1} parent=1 // pred_region
      _
    $region25: #{ginnet_forward.1} parent=1 // pred_fallthru
      _
    // Predicated region
    $region26: #{ginnet_forward.1} parent=1 // pred_check
      _
    $region27: #{ginnet_forward.1} parent=1 // pred_check_branch
      %47 = sbr.rel (0) target = $region29
    $region28: #{ginnet_forward.1} parent=1 // pred_region
      _
    $region29: #{ginnet_forward.1} parent=1 // pred_fallthru
      _
    // Predicated region
    $region30: #{ginnet_forward.1} parent=1 // pred_check
      _
    $region31: #{ginnet_forward.1} parent=1 // pred_check_branch
      %49 = sbr.rel (0) target = $region33
    $region32: #{ginnet_forward.1} parent=1 // pred_region
      _
    $region33: #{ginnet_forward.1} parent=1 // pred_fallthru
      _
    // Predicated region
    $region34: #{ginnet_forward.1} parent=1 // pred_check
      _
    $region35: #{ginnet_forward.1} parent=1 // pred_check_branch
      %51 = sbr.rel (0) target = $region37
    $region36: #{ginnet_forward.1} parent=1 // pred_region
      _
    $region37: #{ginnet_forward.1} parent=1 // pred_fallthru
      _
    // Predicated region
    $region38: #{ginnet_forward.1} parent=1 // pred_check
      _
    $region39: #{ginnet_forward.1} parent=1 // pred_check_branch
      %53 = sbr.rel (0) target = $region41
    $region40: #{ginnet_forward.1} parent=1 // pred_region
      _
    $region41: #{ginnet_forward.1} parent=1 // pred_fallthru
      _
    // Predicated region
    $region42: #{ginnet_forward.1} parent=1 // pred_check
      _
    $region43: #{ginnet_forward.1} parent=1 // pred_check_branch
      %55 = sbr.rel (0) target = $region45
    $region44: #{ginnet_forward.1} parent=1 // pred_region
      _
    $region45: #{ginnet_forward.1} parent=1 // pred_fallthru
      _
    // Predicated region
    $region46: #{ginnet_forward.1} parent=1 // pred_check
      _
    $region47: #{ginnet_forward.1} parent=1 // pred_check_branch
      %57 = sbr.rel (0) target = $region49
    $region48: #{ginnet_forward.1} parent=1 // pred_region
      _
    $region49: #{ginnet_forward.1} parent=1 // pred_fallthru
      _
    // Predicated region
    $region50: #{ginnet_forward.1} parent=1 // pred_check
      _
    $region51: #{ginnet_forward.1} parent=1 // pred_check_branch
      %59 = sbr.rel (0) target = $region53
    $region52: #{ginnet_forward.1} parent=1 // pred_region
      _
    $region53: #{ginnet_forward.1} parent=1 // pred_fallthru
      _
    // Predicated region
    $region54: #{ginnet_forward.1} parent=1 // pred_check
      _
    $region55: #{ginnet_forward.1} parent=1 // pred_check_branch
      %61 = sbr.rel (0) target = $region57
    $region56: #{ginnet_forward.1} parent=1 // pred_region
      _
    $region57: #{ginnet_forward.1} parent=1 // pred_fallthru
      _
    // Predicated region
    $region58: #{ginnet_forward.1} parent=1 // pred_check
      _
    $region59: #{ginnet_forward.1} parent=1 // pred_check_branch
      %63 = sbr.rel (0) target = $region61
    $region60: #{ginnet_forward.1} parent=1 // pred_region
      _
    $region61: #{ginnet_forward.1} parent=1 // pred_fallthru
      _
    // Predicated region
    $region62: #{ginnet_forward.1} parent=1 // pred_check
      _
    $region63: #{ginnet_forward.1} parent=1 // pred_check_branch
      %65 = sbr.rel (0) target = $region65
    $region64: #{ginnet_forward.1} parent=1 // pred_region
      _
    $region65: #{ginnet_forward.1} parent=1 // pred_fallthru
      _
    // Predicated region
    $region66: #{ginnet_forward.1} parent=1 // pred_check
      _
    $region67: #{ginnet_forward.1} parent=1 // pred_check_branch
      %67 = sbr.rel (0) target = $region69
    $region68: #{ginnet_forward.1} parent=1 // pred_region
      _
    $region69: #{ginnet_forward.1} parent=1 // pred_fallthru
      _
    // Predicated region
    $region70: #{ginnet_forward.1} parent=1 // pred_check
      _
    $region71: #{ginnet_forward.1} parent=1 // pred_check_branch
      %69 = sbr.rel (0) target = $region73
    $region72: #{ginnet_forward.1} parent=1 // pred_region
      %70 = dma.done [#allocation4], 16
    $region73: #{ginnet_forward.1} parent=1 // pred_fallthru
      _
    %71 = sfence
    %v73 = vld [vmem:[%s1] sm:$0xf]
    %v74 = vld [vmem:[%s1 + $0x4] sm:$0xf]
    %v75 = vld [vmem:[%s2] sm:$0xff]
    %v76 = vld [vmem:[%s2 + $0x8] sm:$0xff]
    %v77 = vpack.c.bf16 %v76, %v75
    %v80 = vunpack.c.l.b16 %v73
    %v81 = vunpack.c.l.b16 %v74
    %v82 = vpack.c.b16 %v81, %v80
    %vm83 = vcmask 130048
    %v85 = vsel %vm83, %v82, 0
    %87 = vmatprep.subr.bf16.mxu0 0
    %88 = vmatpush1.bf16.msra.mxu0 %v77
    %89 = vmatprep.subr.bf16.mxu0 0
    %90 = vmatpush1.bf16.msra.mxu0 0
    %91 = vmatprep.subr.bf16.mxu0 0
    %92 = vmatpush1.bf16.msra.mxu0 0
    %93 = vmatprep.subr.bf16.mxu0 0
    %94 = vmatpush1.bf16.msra.mxu0 0
    %95 = vmatprep.subr.bf16.mxu0 0
    %96 = vmatpush1.bf16.msra.mxu0 0
    %97 = vmatprep.subr.bf16.mxu0 0
    %98 = vmatpush1.bf16.msra.mxu0 0
    %99 = vmatprep.subr.bf16.mxu0 0
    %100 = vmatpush1.bf16.msra.mxu0 0
    %101 = vmatprep.subr.bf16.mxu0 0
    %102 = vmatpush1.bf16.msra.mxu0 0
    %103 = vmatprep.subr.bf16.mxu0 0
    %104 = vmatpush1.bf16.msra.mxu0 0
    %105 = vmatprep.subr.bf16.mxu0 0
    %106 = vmatpush1.bf16.msra.mxu0 0
    %107 = vmatprep.subr.bf16.mxu0 0
    %108 = vmatpush1.bf16.msra.mxu0 0
    %109 = vmatprep.subr.bf16.mxu0 0
    %110 = vmatpush1.bf16.msra.mxu0 0
    %111 = vmatprep.subr.bf16.mxu0 0
    %112 = vmatpush1.bf16.msra.mxu0 0
    %113 = vmatprep.subr.bf16.mxu0 0
    %114 = vmatpush1.bf16.msra.mxu0 0
    %115 = vmatprep.subr.bf16.mxu0 0
    %116 = vmatpush1.bf16.msra.mxu0 0
    %117 = vmatprep.subr.bf16.mxu0 0
    %118 = vmatpush1.bf16.msra.mxu0 0
    %119 = vmatprep.mubr.bf16.mxu0 0
    %120 = vmatmul.mubr.bf16.gmra.mrb[0].mxu0 %v85
    %v121 = vpop.f32.mrb[0].mxu0
    %v122 = vadd.f32 0.0, %v121
    %v123 = vpop.f32.mrb[0].mxu0
    %v124 = vpop.f32.mrb[0].mxu0
    %v125 = vadd.f32 0.0, %v124
    %v126 = vpop.f32.mrb[0].mxu0
    %127 = vdwg.mxu0
    %s128 = sld [smem:[#allocation2]]
    %s129 = sadd.f32 %s128, 1.0
    %v130 = vstv %s129
    %v131 = vmul.f32 %v130, %v75
    %v132 = vmul.f32 %v130, %v76
    %v133 = vadd.f32 %v131, %v122
    %v134 = vadd.f32 %v132, %v125
    %v135 = vpack.c.bf16 %v134, %v133
    %v136 = vld [vmem:[%s3] sm:$0xf]
    %v137 = vld [vmem:[%s3 + $0x4] sm:$0xf]
    %v138 = vld [vmem:[%s3 + $0x8] sm:$0xf]
    %v139 = vld [vmem:[%s3 + $0xc] sm:$0xf]
    %v140 = vld [vmem:[%s3 + $0x10] sm:$0xf]
    %v141 = vld [vmem:[%s3 + $0x14] sm:$0xf]
    %v142 = vld [vmem:[%s3 + $0x18] sm:$0xf]
    %v143 = vld [vmem:[%s3 + $0x1c] sm:$0xf]
    %v144 = vld [vmem:[%s3 + $0x20] sm:$0xf]
    %v145 = vld [vmem:[%s3 + $0x24] sm:$0xf]
    %v146 = vld [vmem:[%s3 + $0x28] sm:$0xf]
    %v147 = vld [vmem:[%s3 + $0x2c] sm:$0xf]
    %v148 = vld [vmem:[%s3 + $0x30] sm:$0xf]
    %v149 = vld [vmem:[%s3 + $0x34] sm:$0xf]
    %v150 = vld [vmem:[%s3 + $0x38] sm:$0xf]
    %v151 = vld [vmem:[%s3 + $0x3c] sm:$0xf]
    %v152 = vld [vmem:[%s4] sm:$0x1]
    %v154 = vlaneseq
    %v155 = vshrl.u32 %v154, 7
    %v156 = vsub.s32 0, %v155
    %v157 = vrot.slane %v152, %v156
    %v175 = vunpack.c.l.b16 %v136
    %v176 = vunpack.c.l.b16 %v137
    %v177 = vunpack.c.l.b16 %v138
    %v178 = vunpack.c.l.b16 %v139
    %v179 = vunpack.c.l.b16 %v140
    %v180 = vunpack.c.l.b16 %v141
    %v181 = vunpack.c.l.b16 %v142
    %v182 = vunpack.c.l.b16 %v143
    %v183 = vunpack.c.l.b16 %v144
    %v184 = vunpack.c.l.b16 %v145
    %v185 = vunpack.c.l.b16 %v146
    %v186 = vunpack.c.l.b16 %v147
    %v187 = vunpack.c.l.b16 %v148
    %v188 = vunpack.c.l.b16 %v149
    %v189 = vunpack.c.l.b16 %v150
    %v190 = vunpack.c.l.b16 %v151
    %v191 = vpack.c.b16 %v176, %v175
    %v192 = vpack.c.b16 %v178, %v177
    %v193 = vpack.c.b16 %v180, %v179
    %v194 = vpack.c.b16 %v182, %v181
    %v195 = vpack.c.b16 %v184, %v183
    %v196 = vpack.c.b16 %v186, %v185
    %v197 = vpack.c.b16 %v188, %v187
    %v198 = vpack.c.b16 %v190, %v189
    %207 = vmatprep.subr.bf16.mxu0 0
    %208 = vmatpush1.bf16.msra.mxu0 %v191
    %209 = vmatprep.subr.bf16.mxu0 0
    %210 = vmatpush1.bf16.msra.mxu0 %v192
    %211 = vmatprep.subr.bf16.mxu0 0
    %212 = vmatpush1.bf16.msra.mxu0 %v193
    %213 = vmatprep.subr.bf16.mxu0 0
    %214 = vmatpush1.bf16.msra.mxu0 %v194
    %215 = vmatprep.subr.bf16.mxu0 0
    %216 = vmatpush1.bf16.msra.mxu0 %v195
    %217 = vmatprep.subr.bf16.mxu0 0
    %218 = vmatpush1.bf16.msra.mxu0 %v196
    %219 = vmatprep.subr.bf16.mxu0 0
    %220 = vmatpush1.bf16.msra.mxu0 %v197
    %221 = vmatprep.subr.bf16.mxu0 0
    %222 = vmatpush1.bf16.msra.mxu0 %v198
    %223 = vmatprep.subr.bf16.mxu0 0
    %224 = vmatpush1.bf16.msra.mxu0 0
    %225 = vmatprep.subr.bf16.mxu0 0
    %226 = vmatpush1.bf16.msra.mxu0 0
    %227 = vmatprep.subr.bf16.mxu0 0
    %228 = vmatpush1.bf16.msra.mxu0 0
    %229 = vmatprep.subr.bf16.mxu0 0
    %230 = vmatpush1.bf16.msra.mxu0 0
    %231 = vmatprep.subr.bf16.mxu0 0
    %232 = vmatpush1.bf16.msra.mxu0 0
    %233 = vmatprep.subr.bf16.mxu0 0
    %234 = vmatpush1.bf16.msra.mxu0 0
    %235 = vmatprep.subr.bf16.mxu0 0
    %236 = vmatpush1.bf16.msra.mxu0 0
    %237 = vmatprep.subr.bf16.mxu0 0
    %238 = vmatpush1.bf16.msra.mxu0 0
    %239 = vmatprep.mubr.bf16.mxu0 0
    %240 = vmatmul.mubr.bf16.gmra.mrb[0].mxu0 %v135
    %v241 = vpop.f32.mrb[0].mxu0
    %v242 = vadd.f32 %v157, %v241
    %v243 = vpop.f32.mrb[0].mxu0
    %v244 = vpop.f32.mrb[0].mxu0
    %v245 = vadd.f32 %v157, %v244
    %v246 = vpop.f32.mrb[0].mxu0
    %247 = vdwg.mxu0
    %vm248 = vcmp.gt.f32.partialorder %v242, 0.0
    %vm249 = vcmp.gt.f32.partialorder %v245, 0.0
    %v250 = vmul.f32 %v242, 0.01
    %v251 = vmul.f32 %v245, 0.01
    %v252 = vsel %vm248, %v242, %v250
    %v253 = vsel %vm249, %v245, %v251
    %v254 = vpack.c.bf16 %v253, %v252
    %v255 = vld [vmem:[%s5] sm:$0xf]
    %v256 = vld [vmem:[%s5 + $0x4] sm:$0xf]
    %v257 = vld [vmem:[%s5 + $0x8] sm:$0xf]
    %v258 = vld [vmem:[%s5 + $0xc] sm:$0xf]
    %v259 = vld [vmem:[%s5 + $0x10] sm:$0xf]
    %v260 = vld [vmem:[%s5 + $0x14] sm:$0xf]
    %v261 = vld [vmem:[%s5 + $0x18] sm:$0xf]
    %v262 = vld [vmem:[%s5 + $0x1c] sm:$0xf]
    %v263 = vld [vmem:[%s5 + $0x20] sm:$0xf]
    %v264 = vld [vmem:[%s5 + $0x24] sm:$0xf]
    %v265 = vld [vmem:[%s5 + $0x28] sm:$0xf]
    %v266 = vld [vmem:[%s5 + $0x2c] sm:$0xf]
    %v267 = vld [vmem:[%s5 + $0x30] sm:$0xf]
    %v268 = vld [vmem:[%s5 + $0x34] sm:$0xf]
    %v269 = vld [vmem:[%s5 + $0x38] sm:$0xf]
    %v270 = vld [vmem:[%s5 + $0x3c] sm:$0xf]
    %v271 = vld [vmem:[%s6] sm:$0x1]
    %v273 = vlaneseq
    %v274 = vshrl.u32 %v273, 7
    %v275 = vsub.s32 0, %v274
    %v276 = vrot.slane %v271, %v275
    %v294 = vunpack.c.l.b16 %v255
    %v295 = vunpack.c.l.b16 %v256
    %v296 = vunpack.c.l.b16 %v257
    %v297 = vunpack.c.l.b16 %v258
    %v298 = vunpack.c.l.b16 %v259
    %v299 = vunpack.c.l.b16 %v260
    %v300 = vunpack.c.l.b16 %v261
    %v301 = vunpack.c.l.b16 %v262
    %v302 = vunpack.c.l.b16 %v263
    %v303 = vunpack.c.l.b16 %v264
    %v304 = vunpack.c.l.b16 %v265
    %v305 = vunpack.c.l.b16 %v266
    %v306 = vunpack.c.l.b16 %v267
    %v307 = vunpack.c.l.b16 %v268
    %v308 = vunpack.c.l.b16 %v269
    %v309 = vunpack.c.l.b16 %v270
    %v310 = vpack.c.b16 %v295, %v294
    %v311 = vpack.c.b16 %v297, %v296
    %v312 = vpack.c.b16 %v299, %v298
    %v313 = vpack.c.b16 %v301, %v300
    %v314 = vpack.c.b16 %v303, %v302
    %v315 = vpack.c.b16 %v305, %v304
    %v316 = vpack.c.b16 %v307, %v306
    %v317 = vpack.c.b16 %v309, %v308
    %326 = vmatprep.subr.bf16.mxu0 0
    %327 = vmatpush1.bf16.msra.mxu0 %v310
    %328 = vmatprep.subr.bf16.mxu0 0
    %329 = vmatpush1.bf16.msra.mxu0 %v311
    %330 = vmatprep.subr.bf16.mxu0 0
    %331 = vmatpush1.bf16.msra.mxu0 %v312
    %332 = vmatprep.subr.bf16.mxu0 0
    %333 = vmatpush1.bf16.msra.mxu0 %v313
    %334 = vmatprep.subr.bf16.mxu0 0
    %335 = vmatpush1.bf16.msra.mxu0 %v314
    %336 = vmatprep.subr.bf16.mxu0 0
    %337 = vmatpush1.bf16.msra.mxu0 %v315
    %338 = vmatprep.subr.bf16.mxu0 0
    %339 = vmatpush1.bf16.msra.mxu0 %v316
    %340 = vmatprep.subr.bf16.mxu0 0
    %341 = vmatpush1.bf16.msra.mxu0 %v317
    %342 = vmatprep.subr.bf16.mxu0 0
    %343 = vmatpush1.bf16.msra.mxu0 0
    %344 = vmatprep.subr.bf16.mxu0 0
    %345 = vmatpush1.bf16.msra.mxu0 0
    %346 = vmatprep.subr.bf16.mxu0 0
    %347 = vmatpush1.bf16.msra.mxu0 0
    %348 = vmatprep.subr.bf16.mxu0 0
    %349 = vmatpush1.bf16.msra.mxu0 0
    %350 = vmatprep.subr.bf16.mxu0 0
    %351 = vmatpush1.bf16.msra.mxu0 0
    %352 = vmatprep.subr.bf16.mxu0 0
    %353 = vmatpush1.bf16.msra.mxu0 0
    %354 = vmatprep.subr.bf16.mxu0 0
    %355 = vmatpush1.bf16.msra.mxu0 0
    %356 = vmatprep.subr.bf16.mxu0 0
    %357 = vmatpush1.bf16.msra.mxu0 0
    %358 = vmatprep.mubr.bf16.mxu0 0
    %359 = vmatmul.mubr.bf16.gmra.mrb[0].mxu0 %v254
    %v360 = vpop.f32.mrb[0].mxu0
    %v361 = vadd.f32 %v276, %v360
    %v362 = vpop.f32.mrb[0].mxu0
    %v363 = vpop.f32.mrb[0].mxu0
    %v364 = vadd.f32 %v276, %v363
    %v365 = vpop.f32.mrb[0].mxu0
    %366 = vdwg.mxu0
    %vm367 = vcmp.gt.f32.partialorder %v361, 0.0
    %vm368 = vcmp.gt.f32.partialorder %v364, 0.0
    %v369 = vmul.f32 %v361, 0.01
    %v370 = vmul.f32 %v364, 0.01
    %v371 = vsel %vm367, %v361, %v369
    %v372 = vsel %vm368, %v364, %v370
    %v373 = vpack.c.bf16 %v372, %v371
    %374 = vmatprep.subr.bf16.mxu0 0
    %375 = vmatpush1.bf16.msra.mxu0 %v373
    %376 = vmatprep.subr.bf16.mxu0 0
    %377 = vmatpush1.bf16.msra.mxu0 0
    %378 = vmatprep.subr.bf16.mxu0 0
    %379 = vmatpush1.bf16.msra.mxu0 0
    %380 = vmatprep.subr.bf16.mxu0 0
    %381 = vmatpush1.bf16.msra.mxu0 0
    %382 = vmatprep.subr.bf16.mxu0 0
    %383 = vmatpush1.bf16.msra.mxu0 0
    %384 = vmatprep.subr.bf16.mxu0 0
    %385 = vmatpush1.bf16.msra.mxu0 0
    %386 = vmatprep.subr.bf16.mxu0 0
    %387 = vmatpush1.bf16.msra.mxu0 0
    %388 = vmatprep.subr.bf16.mxu0 0
    %389 = vmatpush1.bf16.msra.mxu0 0
    %390 = vmatprep.subr.bf16.mxu0 0
    %391 = vmatpush1.bf16.msra.mxu0 0
    %392 = vmatprep.subr.bf16.mxu0 0
    %393 = vmatpush1.bf16.msra.mxu0 0
    %394 = vmatprep.subr.bf16.mxu0 0
    %395 = vmatpush1.bf16.msra.mxu0 0
    %396 = vmatprep.subr.bf16.mxu0 0
    %397 = vmatpush1.bf16.msra.mxu0 0
    %398 = vmatprep.subr.bf16.mxu0 0
    %399 = vmatpush1.bf16.msra.mxu0 0
    %400 = vmatprep.subr.bf16.mxu0 0
    %401 = vmatpush1.bf16.msra.mxu0 0
    %402 = vmatprep.subr.bf16.mxu0 0
    %403 = vmatpush1.bf16.msra.mxu0 0
    %404 = vmatprep.subr.bf16.mxu0 0
    %405 = vmatpush1.bf16.msra.mxu0 0
    %406 = vmatprep.mubr.bf16.mxu0 0
    %407 = vmatmul.mubr.bf16.gmra.mrb[0].mxu0 %v85
    %v408 = vpop.f32.mrb[0].mxu0
    %v409 = vadd.f32 0.0, %v408
    %v410 = vpop.f32.mrb[0].mxu0
    %v411 = vpop.f32.mrb[0].mxu0
    %v412 = vadd.f32 0.0, %v411
    %v413 = vpop.f32.mrb[0].mxu0
    %414 = vdwg.mxu0
    %s415 = sld [smem:[#allocation2 + $0x1]]
    %s416 = sadd.f32 %s415, 1.0
    %v417 = vstv %s416
    %v418 = vmul.f32 %v417, %v371
    %v419 = vmul.f32 %v417, %v372
    %v420 = vadd.f32 %v418, %v409
    %v421 = vadd.f32 %v419, %v412
    %v422 = vpack.c.bf16 %v421, %v420
    %v423 = vld [vmem:[%s7] sm:$0xf]
    %v424 = vld [vmem:[%s7 + $0x4] sm:$0xf]
    %v425 = vld [vmem:[%s7 + $0x8] sm:$0xf]
    %v426 = vld [vmem:[%s7 + $0xc] sm:$0xf]
    %v427 = vld [vmem:[%s7 + $0x10] sm:$0xf]
    %v428 = vld [vmem:[%s7 + $0x14] sm:$0xf]
    %v429 = vld [vmem:[%s7 + $0x18] sm:$0xf]
    %v430 = vld [vmem:[%s7 + $0x1c] sm:$0xf]
    %v431 = vld [vmem:[%s7 + $0x20] sm:$0xf]
    %v432 = vld [vmem:[%s7 + $0x24] sm:$0xf]
    %v433 = vld [vmem:[%s7 + $0x28] sm:$0xf]
    %v434 = vld [vmem:[%s7 + $0x2c] sm:$0xf]
    %v435 = vld [vmem:[%s7 + $0x30] sm:$0xf]
    %v436 = vld [vmem:[%s7 + $0x34] sm:$0xf]
    %v437 = vld [vmem:[%s7 + $0x38] sm:$0xf]
    %v438 = vld [vmem:[%s7 + $0x3c] sm:$0xf]
    %v439 = vld [vmem:[%s8] sm:$0x1]
    %v441 = vlaneseq
    %v442 = vshrl.u32 %v441, 7
    %v443 = vsub.s32 0, %v442
    %v444 = vrot.slane %v439, %v443
    %v462 = vunpack.c.l.b16 %v423
    %v463 = vunpack.c.l.b16 %v424
    %v464 = vunpack.c.l.b16 %v425
    %v465 = vunpack.c.l.b16 %v426
    %v466 = vunpack.c.l.b16 %v427
    %v467 = vunpack.c.l.b16 %v428
    %v468 = vunpack.c.l.b16 %v429
    %v469 = vunpack.c.l.b16 %v430
    %v470 = vunpack.c.l.b16 %v431
    %v471 = vunpack.c.l.b16 %v432
    %v472 = vunpack.c.l.b16 %v433
    %v473 = vunpack.c.l.b16 %v434
    %v474 = vunpack.c.l.b16 %v435
    %v475 = vunpack.c.l.b16 %v436
    %v476 = vunpack.c.l.b16 %v437
    %v477 = vunpack.c.l.b16 %v438
    %v478 = vpack.c.b16 %v463, %v462
    %v479 = vpack.c.b16 %v465, %v464
    %v480 = vpack.c.b16 %v467, %v466
    %v481 = vpack.c.b16 %v469, %v468
    %v482 = vpack.c.b16 %v471, %v470
    %v483 = vpack.c.b16 %v473, %v472
    %v484 = vpack.c.b16 %v475, %v474
    %v485 = vpack.c.b16 %v477, %v476
    %494 = vmatprep.subr.bf16.mxu0 0
    %495 = vmatpush1.bf16.msra.mxu0 %v478
    %496 = vmatprep.subr.bf16.mxu0 0
    %497 = vmatpush1.bf16.msra.mxu0 %v479
    %498 = vmatprep.subr.bf16.mxu0 0
    %499 = vmatpush1.bf16.msra.mxu0 %v480
    %500 = vmatprep.subr.bf16.mxu0 0
    %501 = vmatpush1.bf16.msra.mxu0 %v481
    %502 = vmatprep.subr.bf16.mxu0 0
    %503 = vmatpush1.bf16.msra.mxu0 %v482
    %504 = vmatprep.subr.bf16.mxu0 0
    %505 = vmatpush1.bf16.msra.mxu0 %v483
    %506 = vmatprep.subr.bf16.mxu0 0
    %507 = vmatpush1.bf16.msra.mxu0 %v484
    %508 = vmatprep.subr.bf16.mxu0 0
    %509 = vmatpush1.bf16.msra.mxu0 %v485
    %510 = vmatprep.subr.bf16.mxu0 0
    %511 = vmatpush1.bf16.msra.mxu0 0
    %512 = vmatprep.subr.bf16.mxu0 0
    %513 = vmatpush1.bf16.msra.mxu0 0
    %514 = vmatprep.subr.bf16.mxu0 0
    %515 = vmatpush1.bf16.msra.mxu0 0
    %516 = vmatprep.subr.bf16.mxu0 0
    %517 = vmatpush1.bf16.msra.mxu0 0
    %518 = vmatprep.subr.bf16.mxu0 0
    %519 = vmatpush1.bf16.msra.mxu0 0
    %520 = vmatprep.subr.bf16.mxu0 0
    %521 = vmatpush1.bf16.msra.mxu0 0
    %522 = vmatprep.subr.bf16.mxu0 0
    %523 = vmatpush1.bf16.msra.mxu0 0
    %524 = vmatprep.subr.bf16.mxu0 0
    %525 = vmatpush1.bf16.msra.mxu0 0
    %526 = vmatprep.mubr.bf16.mxu0 0
    %527 = vmatmul.mubr.bf16.gmra.mrb[0].mxu0 %v422
    %v528 = vpop.f32.mrb[0].mxu0
    %v529 = vadd.f32 %v444, %v528
    %v530 = vpop.f32.mrb[0].mxu0
    %v531 = vpop.f32.mrb[0].mxu0
    %v532 = vadd.f32 %v444, %v531
    %v533 = vpop.f32.mrb[0].mxu0
    %534 = vdwg.mxu0
    %vm535 = vcmp.gt.f32.partialorder %v529, 0.0
    %vm536 = vcmp.gt.f32.partialorder %v532, 0.0
    %v537 = vmul.f32 %v529, 0.01
    %v538 = vmul.f32 %v532, 0.01
    %v539 = vsel %vm535, %v529, %v537
    %v540 = vsel %vm536, %v532, %v538
    %v541 = vpack.c.bf16 %v540, %v539
    %v542 = vld [vmem:[%s9] sm:$0xf]
    %v543 = vld [vmem:[%s9 + $0x4] sm:$0xf]
    %v544 = vld [vmem:[%s9 + $0x8] sm:$0xf]
    %v545 = vld [vmem:[%s9 + $0xc] sm:$0xf]
    %v546 = vld [vmem:[%s9 + $0x10] sm:$0xf]
    %v547 = vld [vmem:[%s9 + $0x14] sm:$0xf]
    %v548 = vld [vmem:[%s9 + $0x18] sm:$0xf]
    %v549 = vld [vmem:[%s9 + $0x1c] sm:$0xf]
    %v550 = vld [vmem:[%s9 + $0x20] sm:$0xf]
    %v551 = vld [vmem:[%s9 + $0x24] sm:$0xf]
    %v552 = vld [vmem:[%s9 + $0x28] sm:$0xf]
    %v553 = vld [vmem:[%s9 + $0x2c] sm:$0xf]
    %v554 = vld [vmem:[%s9 + $0x30] sm:$0xf]
    %v555 = vld [vmem:[%s9 + $0x34] sm:$0xf]
    %v556 = vld [vmem:[%s9 + $0x38] sm:$0xf]
    %v557 = vld [vmem:[%s9 + $0x3c] sm:$0xf]
    %v558 = vld [vmem:[%s10] sm:$0x1]
    %v560 = vlaneseq
    %v561 = vshrl.u32 %v560, 7
    %v562 = vsub.s32 0, %v561
    %v563 = vrot.slane %v558, %v562
    %v581 = vunpack.c.l.b16 %v542
    %v582 = vunpack.c.l.b16 %v543
    %v583 = vunpack.c.l.b16 %v544
    %v584 = vunpack.c.l.b16 %v545
    %v585 = vunpack.c.l.b16 %v546
    %v586 = vunpack.c.l.b16 %v547
    %v587 = vunpack.c.l.b16 %v548
    %v588 = vunpack.c.l.b16 %v549
    %v589 = vunpack.c.l.b16 %v550
    %v590 = vunpack.c.l.b16 %v551
    %v591 = vunpack.c.l.b16 %v552
    %v592 = vunpack.c.l.b16 %v553
    %v593 = vunpack.c.l.b16 %v554
    %v594 = vunpack.c.l.b16 %v555
    %v595 = vunpack.c.l.b16 %v556
    %v596 = vunpack.c.l.b16 %v557
    %v597 = vpack.c.b16 %v582, %v581
    %v598 = vpack.c.b16 %v584, %v583
    %v599 = vpack.c.b16 %v586, %v585
    %v600 = vpack.c.b16 %v588, %v587
    %v601 = vpack.c.b16 %v590, %v589
    %v602 = vpack.c.b16 %v592, %v591
    %v603 = vpack.c.b16 %v594, %v593
    %v604 = vpack.c.b16 %v596, %v595
    %613 = vmatprep.subr.bf16.mxu0 0
    %614 = vmatpush1.bf16.msra.mxu0 %v597
    %615 = vmatprep.subr.bf16.mxu0 0
    %616 = vmatpush1.bf16.msra.mxu0 %v598
    %617 = vmatprep.subr.bf16.mxu0 0
    %618 = vmatpush1.bf16.msra.mxu0 %v599
    %619 = vmatprep.subr.bf16.mxu0 0
    %620 = vmatpush1.bf16.msra.mxu0 %v600
    %621 = vmatprep.subr.bf16.mxu0 0
    %622 = vmatpush1.bf16.msra.mxu0 %v601
    %623 = vmatprep.subr.bf16.mxu0 0
    %624 = vmatpush1.bf16.msra.mxu0 %v602
    %625 = vmatprep.subr.bf16.mxu0 0
    %626 = vmatpush1.bf16.msra.mxu0 %v603
    %627 = vmatprep.subr.bf16.mxu0 0
    %628 = vmatpush1.bf16.msra.mxu0 %v604
    %629 = vmatprep.subr.bf16.mxu0 0
    %630 = vmatpush1.bf16.msra.mxu0 0
    %631 = vmatprep.subr.bf16.mxu0 0
    %632 = vmatpush1.bf16.msra.mxu0 0
    %633 = vmatprep.subr.bf16.mxu0 0
    %634 = vmatpush1.bf16.msra.mxu0 0
    %635 = vmatprep.subr.bf16.mxu0 0
    %636 = vmatpush1.bf16.msra.mxu0 0
    %637 = vmatprep.subr.bf16.mxu0 0
    %638 = vmatpush1.bf16.msra.mxu0 0
    %639 = vmatprep.subr.bf16.mxu0 0
    %640 = vmatpush1.bf16.msra.mxu0 0
    %641 = vmatprep.subr.bf16.mxu0 0
    %642 = vmatpush1.bf16.msra.mxu0 0
    %643 = vmatprep.subr.bf16.mxu0 0
    %644 = vmatpush1.bf16.msra.mxu0 0
    %645 = vmatprep.mubr.bf16.mxu0 0
    %646 = vmatmul.mubr.bf16.gmra.mrb[0].mxu0 %v541
    %v647 = vpop.f32.mrb[0].mxu0
    %v648 = vadd.f32 %v563, %v647
    %v649 = vpop.f32.mrb[0].mxu0
    %v650 = vpop.f32.mrb[0].mxu0
    %v651 = vadd.f32 %v563, %v650
    %v652 = vpop.f32.mrb[0].mxu0
    %653 = vdwg.mxu0
    %vm654 = vcmp.gt.f32.partialorder %v648, 0.0
    %vm655 = vcmp.gt.f32.partialorder %v651, 0.0
    %v656 = vmul.f32 %v648, 0.01
    %v657 = vmul.f32 %v651, 0.01
    %v658 = vsel %vm654, %v648, %v656
    %v659 = vsel %vm655, %v651, %v657
    %v660 = vpack.c.bf16 %v659, %v658
    %661 = vmatprep.subr.bf16.mxu0 0
    %662 = vmatpush1.bf16.msra.mxu0 %v660
    %663 = vmatprep.subr.bf16.mxu0 0
    %664 = vmatpush1.bf16.msra.mxu0 0
    %665 = vmatprep.subr.bf16.mxu0 0
    %666 = vmatpush1.bf16.msra.mxu0 0
    %667 = vmatprep.subr.bf16.mxu0 0
    %668 = vmatpush1.bf16.msra.mxu0 0
    %669 = vmatprep.subr.bf16.mxu0 0
    %670 = vmatpush1.bf16.msra.mxu0 0
    %671 = vmatprep.subr.bf16.mxu0 0
    %672 = vmatpush1.bf16.msra.mxu0 0
    %673 = vmatprep.subr.bf16.mxu0 0
    %674 = vmatpush1.bf16.msra.mxu0 0
    %675 = vmatprep.subr.bf16.mxu0 0
    %676 = vmatpush1.bf16.msra.mxu0 0
    %677 = vmatprep.subr.bf16.mxu0 0
    %678 = vmatpush1.bf16.msra.mxu0 0
    %679 = vmatprep.subr.bf16.mxu0 0
    %680 = vmatpush1.bf16.msra.mxu0 0
    %681 = vmatprep.subr.bf16.mxu0 0
    %682 = vmatpush1.bf16.msra.mxu0 0
    %683 = vmatprep.subr.bf16.mxu0 0
    %684 = vmatpush1.bf16.msra.mxu0 0
    %685 = vmatprep.subr.bf16.mxu0 0
    %686 = vmatpush1.bf16.msra.mxu0 0
    %687 = vmatprep.subr.bf16.mxu0 0
    %688 = vmatpush1.bf16.msra.mxu0 0
    %689 = vmatprep.subr.bf16.mxu0 0
    %690 = vmatpush1.bf16.msra.mxu0 0
    %691 = vmatprep.subr.bf16.mxu0 0
    %692 = vmatpush1.bf16.msra.mxu0 0
    %693 = vmatprep.mubr.bf16.mxu0 0
    %694 = vmatmul.mubr.bf16.gmra.mrb[0].mxu0 %v85
    %v695 = vpop.f32.mrb[0].mxu0
    %v696 = vadd.f32 0.0, %v695
    %v697 = vpop.f32.mrb[0].mxu0
    %v698 = vpop.f32.mrb[0].mxu0
    %v699 = vadd.f32 0.0, %v698
    %v700 = vpop.f32.mrb[0].mxu0
    %701 = vdwg.mxu0
    %s702 = sld [smem:[#allocation2 + $0x2]]
    %s703 = sadd.f32 %s702, 1.0
    %v704 = vstv %s703
    %v705 = vmul.f32 %v704, %v658
    %v706 = vmul.f32 %v704, %v659
    %v707 = vadd.f32 %v705, %v696
    %v708 = vadd.f32 %v706, %v699
    %v709 = vpack.c.bf16 %v708, %v707
    %v710 = vld [vmem:[%s11] sm:$0xf]
    %v711 = vld [vmem:[%s11 + $0x4] sm:$0xf]
    %v712 = vld [vmem:[%s11 + $0x8] sm:$0xf]
    %v713 = vld [vmem:[%s11 + $0xc] sm:$0xf]
    %v714 = vld [vmem:[%s11 + $0x10] sm:$0xf]
    %v715 = vld [vmem:[%s11 + $0x14] sm:$0xf]
    %v716 = vld [vmem:[%s11 + $0x18] sm:$0xf]
    %v717 = vld [vmem:[%s11 + $0x1c] sm:$0xf]
    %v718 = vld [vmem:[%s11 + $0x20] sm:$0xf]
    %v719 = vld [vmem:[%s11 + $0x24] sm:$0xf]
    %v720 = vld [vmem:[%s11 + $0x28] sm:$0xf]
    %v721 = vld [vmem:[%s11 + $0x2c] sm:$0xf]
    %v722 = vld [vmem:[%s11 + $0x30] sm:$0xf]
    %v723 = vld [vmem:[%s11 + $0x34] sm:$0xf]
    %v724 = vld [vmem:[%s11 + $0x38] sm:$0xf]
    %v725 = vld [vmem:[%s11 + $0x3c] sm:$0xf]
    %v726 = vld [vmem:[%s12] sm:$0x1]
    %v728 = vlaneseq
    %v729 = vshrl.u32 %v728, 7
    %v730 = vsub.s32 0, %v729
    %v731 = vrot.slane %v726, %v730
    %v749 = vunpack.c.l.b16 %v710
    %v750 = vunpack.c.l.b16 %v711
    %v751 = vunpack.c.l.b16 %v712
    %v752 = vunpack.c.l.b16 %v713
    %v753 = vunpack.c.l.b16 %v714
    %v754 = vunpack.c.l.b16 %v715
    %v755 = vunpack.c.l.b16 %v716
    %v756 = vunpack.c.l.b16 %v717
    %v757 = vunpack.c.l.b16 %v718
    %v758 = vunpack.c.l.b16 %v719
    %v759 = vunpack.c.l.b16 %v720
    %v760 = vunpack.c.l.b16 %v721
    %v761 = vunpack.c.l.b16 %v722
    %v762 = vunpack.c.l.b16 %v723
    %v763 = vunpack.c.l.b16 %v724
    %v764 = vunpack.c.l.b16 %v725
    %v765 = vpack.c.b16 %v750, %v749
    %v766 = vpack.c.b16 %v752, %v751
    %v767 = vpack.c.b16 %v754, %v753
    %v768 = vpack.c.b16 %v756, %v755
    %v769 = vpack.c.b16 %v758, %v757
    %v770 = vpack.c.b16 %v760, %v759
    %v771 = vpack.c.b16 %v762, %v761
    %v772 = vpack.c.b16 %v764, %v763
    %781 = vmatprep.subr.bf16.mxu0 0
    %782 = vmatpush1.bf16.msra.mxu0 %v765
    %783 = vmatprep.subr.bf16.mxu0 0
    %784 = vmatpush1.bf16.msra.mxu0 %v766
    %785 = vmatprep.subr.bf16.mxu0 0
    %786 = vmatpush1.bf16.msra.mxu0 %v767
    %787 = vmatprep.subr.bf16.mxu0 0
    %788 = vmatpush1.bf16.msra.mxu0 %v768
    %789 = vmatprep.subr.bf16.mxu0 0
    %790 = vmatpush1.bf16.msra.mxu0 %v769
    %791 = vmatprep.subr.bf16.mxu0 0
    %792 = vmatpush1.bf16.msra.mxu0 %v770
    %793 = vmatprep.subr.bf16.mxu0 0
    %794 = vmatpush1.bf16.msra.mxu0 %v771
    %795 = vmatprep.subr.bf16.mxu0 0
    %796 = vmatpush1.bf16.msra.mxu0 %v772
    %797 = vmatprep.subr.bf16.mxu0 0
    %798 = vmatpush1.bf16.msra.mxu0 0
    %799 = vmatprep.subr.bf16.mxu0 0
    %800 = vmatpush1.bf16.msra.mxu0 0
    %801 = vmatprep.subr.bf16.mxu0 0
    %802 = vmatpush1.bf16.msra.mxu0 0
    %803 = vmatprep.subr.bf16.mxu0 0
    %804 = vmatpush1.bf16.msra.mxu0 0
    %805 = vmatprep.subr.bf16.mxu0 0
    %806 = vmatpush1.bf16.msra.mxu0 0
    %807 = vmatprep.subr.bf16.mxu0 0
    %808 = vmatpush1.bf16.msra.mxu0 0
    %809 = vmatprep.subr.bf16.mxu0 0
    %810 = vmatpush1.bf16.msra.mxu0 0
    %811 = vmatprep.subr.bf16.mxu0 0
    %812 = vmatpush1.bf16.msra.mxu0 0
    %813 = vmatprep.mubr.bf16.mxu0 0
    %814 = vmatmul.mubr.bf16.gmra.mrb[0].mxu0 %v709
    %v815 = vpop.f32.mrb[0].mxu0
    %v816 = vadd.f32 %v731, %v815
    %v817 = vpop.f32.mrb[0].mxu0
    %v818 = vpop.f32.mrb[0].mxu0
    %v819 = vadd.f32 %v731, %v818
    %v820 = vpop.f32.mrb[0].mxu0
    %821 = vdwg.mxu0
    %vm822 = vcmp.gt.f32.partialorder %v816, 0.0
    %vm823 = vcmp.gt.f32.partialorder %v819, 0.0
    %v824 = vmul.f32 %v816, 0.01
    %v825 = vmul.f32 %v819, 0.01
    %v826 = vsel %vm822, %v816, %v824
    %v827 = vsel %vm823, %v819, %v825
    %v828 = vpack.c.bf16 %v827, %v826
    %v829 = vld [vmem:[%s13] sm:$0xf]
    %v830 = vld [vmem:[%s13 + $0x4] sm:$0xf]
    %v831 = vld [vmem:[%s13 + $0x8] sm:$0xf]
    %v832 = vld [vmem:[%s13 + $0xc] sm:$0xf]
    %v833 = vld [vmem:[%s13 + $0x10] sm:$0xf]
    %v834 = vld [vmem:[%s13 + $0x14] sm:$0xf]
    %v835 = vld [vmem:[%s13 + $0x18] sm:$0xf]
    %v836 = vld [vmem:[%s13 + $0x1c] sm:$0xf]
    %v837 = vld [vmem:[%s13 + $0x20] sm:$0xf]
    %v838 = vld [vmem:[%s13 + $0x24] sm:$0xf]
    %v839 = vld [vmem:[%s13 + $0x28] sm:$0xf]
    %v840 = vld [vmem:[%s13 + $0x2c] sm:$0xf]
    %v841 = vld [vmem:[%s13 + $0x30] sm:$0xf]
    %v842 = vld [vmem:[%s13 + $0x34] sm:$0xf]
    %v843 = vld [vmem:[%s13 + $0x38] sm:$0xf]
    %v844 = vld [vmem:[%s13 + $0x3c] sm:$0xf]
    %v845 = vld [vmem:[%s14] sm:$0x1]
    %v847 = vlaneseq
    %v848 = vshrl.u32 %v847, 7
    %v849 = vsub.s32 0, %v848
    %v850 = vrot.slane %v845, %v849
    %v868 = vunpack.c.l.b16 %v829
    %v869 = vunpack.c.l.b16 %v830
    %v870 = vunpack.c.l.b16 %v831
    %v871 = vunpack.c.l.b16 %v832
    %v872 = vunpack.c.l.b16 %v833
    %v873 = vunpack.c.l.b16 %v834
    %v874 = vunpack.c.l.b16 %v835
    %v875 = vunpack.c.l.b16 %v836
    %v876 = vunpack.c.l.b16 %v837
    %v877 = vunpack.c.l.b16 %v838
    %v878 = vunpack.c.l.b16 %v839
    %v879 = vunpack.c.l.b16 %v840
    %v880 = vunpack.c.l.b16 %v841
    %v881 = vunpack.c.l.b16 %v842
    %v882 = vunpack.c.l.b16 %v843
    %v883 = vunpack.c.l.b16 %v844
    %v884 = vpack.c.b16 %v869, %v868
    %v885 = vpack.c.b16 %v871, %v870
    %v886 = vpack.c.b16 %v873, %v872
    %v887 = vpack.c.b16 %v875, %v874
    %v888 = vpack.c.b16 %v877, %v876
    %v889 = vpack.c.b16 %v879, %v878
    %v890 = vpack.c.b16 %v881, %v880
    %v891 = vpack.c.b16 %v883, %v882
    %900 = vmatprep.subr.bf16.mxu0 0
    %901 = vmatpush1.bf16.msra.mxu0 %v884
    %902 = vmatprep.subr.bf16.mxu0 0
    %903 = vmatpush1.bf16.msra.mxu0 %v885
    %904 = vmatprep.subr.bf16.mxu0 0
    %905 = vmatpush1.bf16.msra.mxu0 %v886
    %906 = vmatprep.subr.bf16.mxu0 0
    %907 = vmatpush1.bf16.msra.mxu0 %v887
    %908 = vmatprep.subr.bf16.mxu0 0
    %909 = vmatpush1.bf16.msra.mxu0 %v888
    %910 = vmatprep.subr.bf16.mxu0 0
    %911 = vmatpush1.bf16.msra.mxu0 %v889
    %912 = vmatprep.subr.bf16.mxu0 0
    %913 = vmatpush1.bf16.msra.mxu0 %v890
    %914 = vmatprep.subr.bf16.mxu0 0
    %915 = vmatpush1.bf16.msra.mxu0 %v891
    %916 = vmatprep.subr.bf16.mxu0 0
    %917 = vmatpush1.bf16.msra.mxu0 0
    %918 = vmatprep.subr.bf16.mxu0 0
    %919 = vmatpush1.bf16.msra.mxu0 0
    %920 = vmatprep.subr.bf16.mxu0 0
    %921 = vmatpush1.bf16.msra.mxu0 0
    %922 = vmatprep.subr.bf16.mxu0 0
    %923 = vmatpush1.bf16.msra.mxu0 0
    %924 = vmatprep.subr.bf16.mxu0 0
    %925 = vmatpush1.bf16.msra.mxu0 0
    %926 = vmatprep.subr.bf16.mxu0 0
    %927 = vmatpush1.bf16.msra.mxu0 0
    %928 = vmatprep.subr.bf16.mxu0 0
    %929 = vmatpush1.bf16.msra.mxu0 0
    %930 = vmatprep.subr.bf16.mxu0 0
    %931 = vmatpush1.bf16.msra.mxu0 0
    %932 = vmatprep.mubr.bf16.mxu0 0
    %933 = vmatmul.mubr.bf16.gmra.mrb[0].mxu0 %v828
    %v934 = vpop.f32.mrb[0].mxu0
    %v935 = vadd.f32 %v850, %v934
    %v936 = vpop.f32.mrb[0].mxu0
    %v937 = vpop.f32.mrb[0].mxu0
    %v938 = vadd.f32 %v850, %v937
    %v939 = vpop.f32.mrb[0].mxu0
    %940 = vdwg.mxu0
    %vm941 = vcmp.gt.f32.partialorder %v935, 0.0
    %vm942 = vcmp.gt.f32.partialorder %v938, 0.0
    %v943 = vmul.f32 %v935, 0.01
    %v944 = vmul.f32 %v938, 0.01
    %v945 = vsel %vm941, %v935, %v943
    %v946 = vsel %vm942, %v938, %v944
    %947 = vst [vmem:[#allocation5] sm:$0xff] %v945
    %948 = vst [vmem:[#allocation5 + $0x8] sm:$0xff] %v946
    %v949 = vpack.c.bf16 %v946, %v945
    %v950 = vld [vmem:[%s15] sm:$0xf]
    %v951 = vld [vmem:[%s15 + $0x4] sm:$0xf]
    %v952 = vld [vmem:[%s15 + $0x8] sm:$0xf]
    %v953 = vld [vmem:[%s15 + $0xc] sm:$0xf]
    %v954 = vld [vmem:[%s15 + $0x10] sm:$0xf]
    %v955 = vld [vmem:[%s15 + $0x14] sm:$0xf]
    %v956 = vld [vmem:[%s15 + $0x18] sm:$0xf]
    %v957 = vld [vmem:[%s15 + $0x1c] sm:$0xf]
    %v958 = vld [vmem:[%s15 + $0x20] sm:$0xf]
    %v959 = vld [vmem:[%s15 + $0x24] sm:$0xf]
    %v960 = vld [vmem:[%s15 + $0x28] sm:$0xf]
    %v961 = vld [vmem:[%s15 + $0x2c] sm:$0xf]
    %v962 = vld [vmem:[%s15 + $0x30] sm:$0xf]
    %v963 = vld [vmem:[%s15 + $0x34] sm:$0xf]
    %v964 = vld [vmem:[%s15 + $0x38] sm:$0xf]
    %v965 = vld [vmem:[%s15 + $0x3c] sm:$0xf]
    %v966 = vld [vmem:[%s16] sm:$0x1]
    %v968 = vlaneseq
    %v969 = vshrl.u32 %v968, 7
    %v970 = vsub.s32 0, %v969
    %v971 = vrot.slane %v966, %v970
    %v989 = vunpack.c.l.b16 %v950
    %v990 = vunpack.c.l.b16 %v951
    %v991 = vunpack.c.l.b16 %v952
    %v992 = vunpack.c.l.b16 %v953
    %v993 = vunpack.c.l.b16 %v954
    %v994 = vunpack.c.l.b16 %v955
    %v995 = vunpack.c.l.b16 %v956
    %v996 = vunpack.c.l.b16 %v957
    %v997 = vunpack.c.l.b16 %v958
    %v998 = vunpack.c.l.b16 %v959
    %v999 = vunpack.c.l.b16 %v960
    %v1000 = vunpack.c.l.b16 %v961
    %v1001 = vunpack.c.l.b16 %v962
    %v1002 = vunpack.c.l.b16 %v963
    %v1003 = vunpack.c.l.b16 %v964
    %v1004 = vunpack.c.l.b16 %v965
    %v1005 = vpack.c.b16 %v990, %v989
    %v1006 = vpack.c.b16 %v992, %v991
    %v1007 = vpack.c.b16 %v994, %v993
    %v1008 = vpack.c.b16 %v996, %v995
    %v1009 = vpack.c.b16 %v998, %v997
    %v1010 = vpack.c.b16 %v1000, %v999
    %v1011 = vpack.c.b16 %v1002, %v1001
    %v1012 = vpack.c.b16 %v1004, %v1003
    %1021 = vmatprep.subr.bf16.mxu0 0
    %1022 = vmatpush1.bf16.msra.mxu0 %v1005
    %1023 = vmatprep.subr.bf16.mxu0 0
    %1024 = vmatpush1.bf16.msra.mxu0 %v1006
    %1025 = vmatprep.subr.bf16.mxu0 0
    %1026 = vmatpush1.bf16.msra.mxu0 %v1007
    %1027 = vmatprep.subr.bf16.mxu0 0
    %1028 = vmatpush1.bf16.msra.mxu0 %v1008
    %1029 = vmatprep.subr.bf16.mxu0 0
    %1030 = vmatpush1.bf16.msra.mxu0 %v1009
    %1031 = vmatprep.subr.bf16.mxu0 0
    %1032 = vmatpush1.bf16.msra.mxu0 %v1010
    %1033 = vmatprep.subr.bf16.mxu0 0
    %1034 = vmatpush1.bf16.msra.mxu0 %v1011
    %1035 = vmatprep.subr.bf16.mxu0 0
    %1036 = vmatpush1.bf16.msra.mxu0 %v1012
    %1037 = vmatprep.subr.bf16.mxu0 0
    %1038 = vmatpush1.bf16.msra.mxu0 0
    %1039 = vmatprep.subr.bf16.mxu0 0
    %1040 = vmatpush1.bf16.msra.mxu0 0
    %1041 = vmatprep.subr.bf16.mxu0 0
    %1042 = vmatpush1.bf16.msra.mxu0 0
    %1043 = vmatprep.subr.bf16.mxu0 0
    %1044 = vmatpush1.bf16.msra.mxu0 0
    %1045 = vmatprep.subr.bf16.mxu0 0
    %1046 = vmatpush1.bf16.msra.mxu0 0
    %1047 = vmatprep.subr.bf16.mxu0 0
    %1048 = vmatpush1.bf16.msra.mxu0 0
    %1049 = vmatprep.subr.bf16.mxu0 0
    %1050 = vmatpush1.bf16.msra.mxu0 0
    %1051 = vmatprep.subr.bf16.mxu0 0
    %1052 = vmatpush1.bf16.msra.mxu0 0
    %1053 = vmatprep.mubr.bf16.mxu0 0
    %1054 = vmatmul.mubr.bf16.gmra.mrb[0].mxu0 %v949
    %v1055 = vpop.f32.mrb[0].mxu0
    %v1056 = vadd.f32 %v971, %v1055
    %v1057 = vpop.f32.mrb[0].mxu0
    %v1058 = vpop.f32.mrb[0].mxu0
    %v1059 = vadd.f32 %v971, %v1058
    %v1060 = vpop.f32.mrb[0].mxu0
    %1061 = vdwg.mxu0
    %1062 = vst [vmem:[%s17] sm:$0xff] %v1056
    %1063 = vst [vmem:[%s17 + $0x8] sm:$0xff] %v1059
    // Predicated region
    $region74: #{ginnet_forward.1} parent=1 // pred_check
      _
    $region75: #{ginnet_forward.1} parent=1 // pred_check_branch
      %1065 = sbr.rel (0) target = $region77
    $region76: #{ginnet_forward.1} parent=1 // pred_region
      _
    $region77: #{ginnet_forward.1} parent=1 // pred_fallthru
      _
    // Predicated region
    $region78: #{ginnet_forward.1} parent=1 // pred_check
      _
    $region79: #{ginnet_forward.1} parent=1 // pred_check_branch
      %1067 = sbr.rel (0) target = $region81
    $region80: #{ginnet_forward.1} parent=1 // pred_region
      %s1069 = ssub.s32 256, 256
      %1070 = vsyncadd [#allocation3], %s1069
      %s1071 = sshll.u32 [#allocation5], 4
      %s1072 = int_to_ptr.vmem [resolvable:$true] %s1071
      %1077 = dma.vmem_to_hbm [thread:$0]  %s1072, 256, %s18, [#allocation3], 128, 128, 8
    $region81: #{ginnet_forward.1} parent=1 // pred_fallthru
      _
    // Predicated region
    $region82: #{ginnet_forward.1} parent=1 // pred_check
      _
    $region83: #{ginnet_forward.1} parent=1 // pred_check_branch
      %1079 = sbr.rel (0) target = $region85
    $region84: #{ginnet_forward.1} parent=1 // pred_region
      _
    $region85: #{ginnet_forward.1} parent=1 // pred_fallthru
      _
    // Predicated region
    $region86: #{ginnet_forward.1} parent=1 // pred_check
      _
    $region87: #{ginnet_forward.1} parent=1 // pred_check_branch
      %1081 = sbr.rel (0) target = $region89
    $region88: #{ginnet_forward.1} parent=1 // pred_region
      %1082 = dma.done [#allocation3], 256
    $region89: #{ginnet_forward.1} parent=1 // pred_fallthru
      _
    %1083 = vsyncpa [#allocation3], 1
    %1084 = vsyncpa [#allocation4], 1

</llo_original>
